<compile_context>
chip_gen: v5e
topology: v5e:2x2
jax: 0.10.0
libtpu: 0.0.40
codegen_flags: <defaults>
</compile_context>

<pallas_src>
import jax
import jax.numpy as jnp
from jax import lax
from jax.experimental import pallas as pl
from jax.experimental.pallas import tpu as pltpu

EPS = 1e-5

H = W = 14     # spatial size implied by the module
C = 240        # channels
CP = 256       # channel axis padded to a lane-dense multiple of 128
WP = 16        # W (+ halo) padded to a sublane-dense multiple of 8
HP = 16        # H + 2 halo rows


def dwconv_bn_kernel(x_ref, w_ref, g_ref, b_ref, o_ref,
                     s_ref, sum_ref, ssq_ref):
    # x_ref  : (H, W, CP)       NHWC input (batch squeezed), channels zero-padded
    # w_ref  : (9, CP)          depthwise 3x3 taps, row-major (ky*3+kx, c)
    # g_ref  : (1, CP)          BN gamma (zero in padded lanes)
    # b_ref  : (1, CP)          BN beta  (zero in padded lanes)
    # o_ref  : (H, WP, CP)      output rows; cols >= W are padding, cropped later
    # s_ref  : (3, HP, WP, CP)  W-pre-shifted, spatially zero-padded input copies
    #                           s[j, r, w, c] = x[r-1, w + (j-1), c] (0 outside)
    # sum_ref: (1, CP)          per-channel running sum of conv outputs
    # ssq_ref: (1, CP)          per-channel running sum of squares

    # ---- init ---------------------------------------------------------------
    s_ref[...] = jnp.zeros_like(s_ref)
    sum_ref[...] = jnp.zeros_like(sum_ref)
    ssq_ref[...] = jnp.zeros_like(ssq_ref)

    # ---- stage 1: build the three W-shifted halo copies, one row at a time ---
    # (rows 0 and HP-1 and the unwritten columns stay zero = the conv halo)
    def fill_row(h, carry):
        s_ref[1, h + 1, 0:W, :] = x_ref[h]                    # kx =  0
        s_ref[2, h + 1, 0:W - 1, :] = x_ref[h, 1:W, :]        # kx = +1
        s_ref[0, h + 1, 1:W, :] = x_ref[h, 0:W - 1, :]        # kx = -1
        return carry

    lax.fori_loop(0, H, fill_row, 0)

    # ---- stage 2: depthwise 3x3 conv, streamed per output row, with stats ----
    def conv_row(h, carry):
        acc = jnp.zeros((WP, CP), jnp.float32)
        for ky in range(3):
            for kx in range(3):
                k = 3 * ky + kx
                tap = w_ref[k:k + 1, :]                       # (1, CP)
                acc = acc + s_ref[kx, h + ky] * tap           # (WP, CP)
        # Padded W columns and padded channel lanes of `acc` are exactly zero,
        # so they neither pollute the statistics nor the stored row.
        o_ref[h] = acc
        sum_ref[...] += jnp.sum(acc, axis=0, keepdims=True)
        ssq_ref[...] += jnp.sum(acc * acc, axis=0, keepdims=True)
        return carry

    lax.fori_loop(0, H, conv_row, 0)

    # ---- stage 3: BN (training mode -> biased batch stats), single FMA pass ---
    inv_n = 1.0 / float(H * W)                                # N = 1
    mean = sum_ref[...] * inv_n                               # (1, CP)
    var = ssq_ref[...] * inv_n - mean * mean                  # biased variance
    scale = g_ref[...] * lax.rsqrt(var + EPS)                 # (1, CP)
    bias = b_ref[...] - mean * scale                          # (1, CP)

    def norm_row(h, carry):
        o_ref[h] = o_ref[h] * scale + bias
        return carry

    lax.fori_loop(0, H, norm_row, 0)


@jax.jit
def dwconv_bn(x_nchw, weight, gamma, beta):
    """x_nchw: (1, C, H, W); weight: (C, 1, 3, 3); gamma/beta: (C,)."""
    n, c, h, w = x_nchw.shape
    assert (n, c, h, w) == (1, C, H, W)

    # Glue required by the NCHW interface: NCHW -> HWC and zero-pad the channel
    # axis to 256 (lane-dense).  Spatial padding is NOT materialized here --
    # the kernel builds the 3x3 halo internally in VMEM.
    x_hwc = jnp.transpose(x_nchw[0], (1, 2, 0)).astype(jnp.float32)     # (H, W, C)
    x_hwc = jnp.pad(x_hwc, ((0, 0), (0, 0), (0, CP - C)))               # (H, W, CP)

    # (C,1,3,3) -> (3,3,C) -> (9,C) -> (9,CP)
    w_taps = jnp.transpose(weight[:, 0, :, :], (1, 2, 0)).reshape(9, C)
    w_taps = jnp.pad(w_taps.astype(jnp.float32), ((0, 0), (0, CP - C)))
    g2 = jnp.pad(gamma.astype(jnp.float32).reshape(1, C), ((0, 0), (0, CP - C)))
    b2 = jnp.pad(beta.astype(jnp.float32).reshape(1, C), ((0, 0), (0, CP - C)))

    out = pl.pallas_call(
        dwconv_bn_kernel,
        out_shape=jax.ShapeDtypeStruct((H, WP, CP), jnp.float32),
        in_specs=[pl.BlockSpec(memory_space=pltpu.MemorySpace.VMEM)] * 4,
        out_specs=pl.BlockSpec(memory_space=pltpu.MemorySpace.VMEM),
        scratch_shapes=[
            pltpu.VMEM((3, HP, WP, CP), jnp.float32),   # pre-shifted halo copies
            pltpu.VMEM((1, CP), jnp.float32),           # per-channel sum
            pltpu.VMEM((1, CP), jnp.float32),           # per-channel sum of squares
        ],
    )(x_hwc, w_taps, g2, b2)

    # Crop padded W columns / channel lanes and return NCHW to match PyTorch.
    out = out[:, :W, :C]                                # (H, W, C)
    return jnp.transpose(out, (2, 0, 1))[None]          # (1, C, H, W)


def reference(x_nchw, weight, gamma, beta):
    """Pure-JAX reference: depthwise conv + training-mode batchnorm (NCHW)."""
    c = x_nchw.shape[1]
    y = lax.conv_general_dilated(
        x_nchw.astype(jnp.float32), weight.astype(jnp.float32),
        window_strides=(1, 1), padding=((1, 1), (1, 1)),
        dimension_numbers=("NCHW", "OIHW", "NCHW"),
        feature_group_count=c)
    mean = jnp.mean(y, axis=(0, 2, 3), keepdims=True)
    var = jnp.mean((y - mean) ** 2, axis=(0, 2, 3), keepdims=True)
    yhat = (y - mean) * lax.rsqrt(var + EPS)
    return yhat * gamma.reshape(1, c, 1, 1) + beta.reshape(1, c, 1, 1)


if __name__ == "__main__":
    key = jax.random.PRNGKey(0)
    k_x, k_w, k_g, k_b = jax.random.split(key, 4)

    N = 1                                   # shapes implied by the module
    x = jax.random.normal(k_x, (N, C, H, W), dtype=jnp.float32)
    weight = jax.random.normal(k_w, (C, 1, 3, 3), dtype=jnp.float32) * 0.1
    gamma = 1.0 + 0.1 * jax.random.normal(k_g, (C,), dtype=jnp.float32)
    beta = 0.1 * jax.random.normal(k_b, (C,), dtype=jnp.float32)

    out = dwconv_bn(x, weight, gamma, beta)
    jax.block_until_ready(out)

    ref = reference(x, weight, gamma, beta)
    assert out.shape == (N, C, H, W)
    err = float(jnp.max(jnp.abs(out - ref)))
    assert err < 1e-4, f"mismatch vs. pure-JAX reference: {err}"

    print("KERNEL_OK")
</pallas_src>

<mosaic_0001>
module attributes {stable_mosaic.version = 11 : i64} {
  func.func @dwconv_bn_kernel(%arg0: memref<14x14x256xf32, #tpu.memory_space<vmem>>, %arg1: memref<9x256xf32, #tpu.memory_space<vmem>>, %arg2: memref<1x256xf32, #tpu.memory_space<vmem>>, %arg3: memref<1x256xf32, #tpu.memory_space<vmem>>, %arg4: memref<14x16x256xf32, #tpu.memory_space<vmem>>, %arg5: memref<3x16x16x256xf32, #tpu.memory_space<vmem>>, %arg6: memref<1x256xf32, #tpu.memory_space<vmem>>, %arg7: memref<1x256xf32, #tpu.memory_space<vmem>>) attributes {dimension_semantics = [], scalar_prefetch = 0 : i64, scratch_operands = 3 : i64, tpu.core_type = #tpu.core_type<tc>} {
    %cst = arith.constant 0.000000e+00 : f32
    %0 = vector.broadcast %cst : f32 to vector<3x16x16x256xf32>
    %c0 = arith.constant 0 : index
    %c0_0 = arith.constant 0 : index
    %c0_1 = arith.constant 0 : index
    %c0_2 = arith.constant 0 : index
    %1 = vector.load %arg5[%c0, %c0_0, %c0_1, %c0_2] : memref<3x16x16x256xf32, #tpu.memory_space<vmem>>, vector<3x16x16x256xf32>
    tpu.vector_store %arg5[%c0, %c0_0, %c0_1, %c0_2], %0 {strides = array<i32>} : memref<3x16x16x256xf32, #tpu.memory_space<vmem>>, vector<3x16x16x256xf32>,
    %cst_3 = arith.constant 0.000000e+00 : f32
    %2 = vector.broadcast %cst_3 : f32 to vector<1x256xf32>
    %c0_4 = arith.constant 0 : index
    %c0_5 = arith.constant 0 : index
    %3 = vector.load %arg6[%c0_4, %c0_5] : memref<1x256xf32, #tpu.memory_space<vmem>>, vector<1x256xf32>
    tpu.vector_store %arg6[%c0_4, %c0_5], %2 {strides = array<i32>} : memref<1x256xf32, #tpu.memory_space<vmem>>, vector<1x256xf32>,
    %cst_6 = arith.constant 0.000000e+00 : f32
    %4 = vector.broadcast %cst_6 : f32 to vector<1x256xf32>
    %c0_7 = arith.constant 0 : index
    %c0_8 = arith.constant 0 : index
    %5 = vector.load %arg7[%c0_7, %c0_8] : memref<1x256xf32, #tpu.memory_space<vmem>>, vector<1x256xf32>
    tpu.vector_store %arg7[%c0_7, %c0_8], %4 {strides = array<i32>} : memref<1x256xf32, #tpu.memory_space<vmem>>, vector<1x256xf32>,
    %c0_i32 = arith.constant 0 : i32
    %c14_i32 = arith.constant 14 : i32
    %6 = arith.addi %c0_i32, %c14_i32 : i32
    %c1_i32 = arith.constant 1 : i32
    scf.for %arg8 = %c0_i32 to %6 step %c1_i32  : i32 {
      %25 = arith.index_cast %arg8 : i32 to index
      %c0_29 = arith.constant 0 : index
      %c0_30 = arith.constant 0 : index
      %26 = vector.load %arg0[%25, %c0_29, %c0_30] : memref<14x14x256xf32, #tpu.memory_space<vmem>>, vector<1x14x256xf32>
      %27 = vector.shape_cast %26 : vector<1x14x256xf32> to vector<14x256xf32>
      %c1_i32_31 = arith.constant 1 : i32
      %28 = arith.addi %arg8, %c1_i32_31 : i32
      %c1 = arith.constant 1 : index
      %29 = arith.index_cast %28 : i32 to index
      %c0_32 = arith.constant 0 : index
      %c0_33 = arith.constant 0 : index
      %30 = vector.load %arg5[%c1, %29, %c0_32, %c0_33] : memref<3x16x16x256xf32, #tpu.memory_space<vmem>>, vector<1x1x14x256xf32>
      %31 = vector.shape_cast %30 : vector<1x1x14x256xf32> to vector<14x256xf32>
      %32 = vector.shape_cast %27 : vector<14x256xf32> to vector<1x1x14x256xf32>
      tpu.vector_store %arg5[%c1, %29, %c0_32, %c0_33], %32 {strides = array<i32>} : memref<3x16x16x256xf32, #tpu.memory_space<vmem>>, vector<1x1x14x256xf32>,
      %33 = arith.index_cast %arg8 : i32 to index
      %c1_34 = arith.constant 1 : index
      %c0_35 = arith.constant 0 : index
      %34 = vector.load %arg0[%33, %c1_34, %c0_35] : memref<14x14x256xf32, #tpu.memory_space<vmem>>, vector<1x13x256xf32>
      %35 = vector.shape_cast %34 : vector<1x13x256xf32> to vector<13x256xf32>
      %c1_i32_36 = arith.constant 1 : i32
      %36 = arith.addi %arg8, %c1_i32_36 : i32
      %c2 = arith.constant 2 : index
      %37 = arith.index_cast %36 : i32 to index
      %c0_37 = arith.constant 0 : index
      %c0_38 = arith.constant 0 : index
      %38 = vector.load %arg5[%c2, %37, %c0_37, %c0_38] : memref<3x16x16x256xf32, #tpu.memory_space<vmem>>, vector<1x1x13x256xf32>
      %39 = vector.shape_cast %38 : vector<1x1x13x256xf32> to vector<13x256xf32>
      %40 = vector.shape_cast %35 : vector<13x256xf32> to vector<1x1x13x256xf32>
      tpu.vector_store %arg5[%c2, %37, %c0_37, %c0_38], %40 {strides = array<i32>} : memref<3x16x16x256xf32, #tpu.memory_space<vmem>>, vector<1x1x13x256xf32>,
      %41 = arith.index_cast %arg8 : i32 to index
      %c0_39 = arith.constant 0 : index
      %c0_40 = arith.constant 0 : index
      %42 = vector.load %arg0[%41, %c0_39, %c0_40] : memref<14x14x256xf32, #tpu.memory_space<vmem>>, vector<1x13x256xf32>
      %43 = vector.shape_cast %42 : vector<1x13x256xf32> to vector<13x256xf32>
      %c1_i32_41 = arith.constant 1 : i32
      %44 = arith.addi %arg8, %c1_i32_41 : i32
      %c0_42 = arith.constant 0 : index
      %45 = arith.index_cast %44 : i32 to index
      %c1_43 = arith.constant 1 : index
      %c0_44 = arith.constant 0 : index
      %46 = vector.load %arg5[%c0_42, %45, %c1_43, %c0_44] : memref<3x16x16x256xf32, #tpu.memory_space<vmem>>, vector<1x1x13x256xf32>
      %47 = vector.shape_cast %46 : vector<1x1x13x256xf32> to vector<13x256xf32>
      %48 = vector.shape_cast %43 : vector<13x256xf32> to vector<1x1x13x256xf32>
      tpu.vector_store %arg5[%c0_42, %45, %c1_43, %c0_44], %48 {strides = array<i32>} : memref<3x16x16x256xf32, #tpu.memory_space<vmem>>, vector<1x1x13x256xf32>,
    }
    %c14_i32_9 = arith.constant 14 : i32
    %c0_i32_10 = arith.constant 0 : i32
    %c14_i32_11 = arith.constant 14 : i32
    %7 = arith.addi %c0_i32_10, %c14_i32_11 : i32
    %c1_i32_12 = arith.constant 1 : i32
    scf.for %arg8 = %c0_i32_10 to %7 step %c1_i32_12  : i32 {
      %cst_29 = arith.constant 0.000000e+00 : f32
      %25 = vector.broadcast %cst_29 : f32 to vector<16x256xf32>
      %c0_30 = arith.constant 0 : index
      %c0_31 = arith.constant 0 : index
      %26 = vector.load %arg1[%c0_30, %c0_31] : memref<9x256xf32, #tpu.memory_space<vmem>>, vector<1x256xf32>
      %c0_i32_32 = arith.constant 0 : i32
      %27 = arith.addi %arg8, %c0_i32_32 : i32
      %c0_33 = arith.constant 0 : index
      %28 = arith.index_cast %27 : i32 to index
      %c0_34 = arith.constant 0 : index
      %c0_35 = arith.constant 0 : index
      %29 = vector.load %arg5[%c0_33, %28, %c0_34, %c0_35] : memref<3x16x16x256xf32, #tpu.memory_space<vmem>>, vector<1x1x16x256xf32>
      %30 = vector.shape_cast %29 : vector<1x1x16x256xf32> to vector<16x256xf32>
      %31 = vector.broadcast %26 : vector<1x256xf32> to vector<16x256xf32>
      %32 = arith.mulf %30, %31 : vector<16x256xf32>
      %33 = arith.addf %25, %32 : vector<16x256xf32>
      %c1 = arith.constant 1 : index
      %c0_36 = arith.constant 0 : index
      %34 = vector.load %arg1[%c1, %c0_36] : memref<9x256xf32, #tpu.memory_space<vmem>>, vector<1x256xf32>
      %c0_i32_37 = arith.constant 0 : i32
      %35 = arith.addi %arg8, %c0_i32_37 : i32
      %c1_38 = arith.constant 1 : index
      %36 = arith.index_cast %35 : i32 to index
      %c0_39 = arith.constant 0 : index
      %c0_40 = arith.constant 0 : index
      %37 = vector.load %arg5[%c1_38, %36, %c0_39, %c0_40] : memref<3x16x16x256xf32, #tpu.memory_space<vmem>>, vector<1x1x16x256xf32>
      %38 = vector.shape_cast %37 : vector<1x1x16x256xf32> to vector<16x256xf32>
      %39 = vector.broadcast %34 : vector<1x256xf32> to vector<16x256xf32>
      %40 = arith.mulf %38, %39 : vector<16x256xf32>
      %41 = arith.addf %33, %40 : vector<16x256xf32>
      %c2 = arith.constant 2 : index
      %c0_41 = arith.constant 0 : index
      %42 = vector.load %arg1[%c2, %c0_41] : memref<9x256xf32, #tpu.memory_space<vmem>>, vector<1x256xf32>
      %c0_i32_42 = arith.constant 0 : i32
      %43 = arith.addi %arg8, %c0_i32_42 : i32
      %c2_43 = arith.constant 2 : index
      %44 = arith.index_cast %43 : i32 to index
      %c0_44 = arith.constant 0 : index
      %c0_45 = arith.constant 0 : index
      %45 = vector.load %arg5[%c2_43, %44, %c0_44, %c0_45] : memref<3x16x16x256xf32, #tpu.memory_space<vmem>>, vector<1x1x16x256xf32>
      %46 = vector.shape_cast %45 : vector<1x1x16x256xf32> to vector<16x256xf32>
      %47 = vector.broadcast %42 : vector<1x256xf32> to vector<16x256xf32>
      %48 = arith.mulf %46, %47 : vector<16x256xf32>
      %49 = arith.addf %41, %48 : vector<16x256xf32>
      %c3 = arith.constant 3 : index
      %c0_46 = arith.constant 0 : index
      %50 = vector.load %arg1[%c3, %c0_46] : memref<9x256xf32, #tpu.memory_space<vmem>>, vector<1x256xf32>
      %c1_i32_47 = arith.constant 1 : i32
      %51 = arith.addi %arg8, %c1_i32_47 : i32
      %c0_48 = arith.constant 0 : index
      %52 = arith.index_cast %51 : i32 to index
      %c0_49 = arith.constant 0 : index
      %c0_50 = arith.constant 0 : index
      %53 = vector.load %arg5[%c0_48, %52, %c0_49, %c0_50] : memref<3x16x16x256xf32, #tpu.memory_space<vmem>>, vector<1x1x16x256xf32>
      %54 = vector.shape_cast %53 : vector<1x1x16x256xf32> to vector<16x256xf32>
      %55 = vector.broadcast %50 : vector<1x256xf32> to vector<16x256xf32>
      %56 = arith.mulf %54, %55 : vector<16x256xf32>
      %57 = arith.addf %49, %56 : vector<16x256xf32>
      %c4 = arith.constant 4 : index
      %c0_51 = arith.constant 0 : index
      %58 = vector.load %arg1[%c4, %c0_51] : memref<9x256xf32, #tpu.memory_space<vmem>>, vector<1x256xf32>
      %c1_i32_52 = arith.constant 1 : i32
      %59 = arith.addi %arg8, %c1_i32_52 : i32
      %c1_53 = arith.constant 1 : index
      %60 = arith.index_cast %59 : i32 to index
      %c0_54 = arith.constant 0 : index
      %c0_55 = arith.constant 0 : index
      %61 = vector.load %arg5[%c1_53, %60, %c0_54, %c0_55] : memref<3x16x16x256xf32, #tpu.memory_space<vmem>>, vector<1x1x16x256xf32>
      %62 = vector.shape_cast %61 : vector<1x1x16x256xf32> to vector<16x256xf32>
      %63 = vector.broadcast %58 : vector<1x256xf32> to vector<16x256xf32>
      %64 = arith.mulf %62, %63 : vector<16x256xf32>
      %65 = arith.addf %57, %64 : vector<16x256xf32>
      %c5 = arith.constant 5 : index
      %c0_56 = arith.constant 0 : index
      %66 = vector.load %arg1[%c5, %c0_56] : memref<9x256xf32, #tpu.memory_space<vmem>>, vector<1x256xf32>
      %c1_i32_57 = arith.constant 1 : i32
      %67 = arith.addi %arg8, %c1_i32_57 : i32
      %c2_58 = arith.constant 2 : index
      %68 = arith.index_cast %67 : i32 to index
      %c0_59 = arith.constant 0 : index
      %c0_60 = arith.constant 0 : index
      %69 = vector.load %arg5[%c2_58, %68, %c0_59, %c0_60] : memref<3x16x16x256xf32, #tpu.memory_space<vmem>>, vector<1x1x16x256xf32>
      %70 = vector.shape_cast %69 : vector<1x1x16x256xf32> to vector<16x256xf32>
      %71 = vector.broadcast %66 : vector<1x256xf32> to vector<16x256xf32>
      %72 = arith.mulf %70, %71 : vector<16x256xf32>
      %73 = arith.addf %65, %72 : vector<16x256xf32>
      %c6 = arith.constant 6 : index
      %c0_61 = arith.constant 0 : index
      %74 = vector.load %arg1[%c6, %c0_61] : memref<9x256xf32, #tpu.memory_space<vmem>>, vector<1x256xf32>
      %c2_i32 = arith.constant 2 : i32
      %75 = arith.addi %arg8, %c2_i32 : i32
      %c0_62 = arith.constant 0 : index
      %76 = arith.index_cast %75 : i32 to index
      %c0_63 = arith.constant 0 : index
      %c0_64 = arith.constant 0 : index
      %77 = vector.load %arg5[%c0_62, %76, %c0_63, %c0_64] : memref<3x16x16x256xf32, #tpu.memory_space<vmem>>, vector<1x1x16x256xf32>
      %78 = vector.shape_cast %77 : vector<1x1x16x256xf32> to vector<16x256xf32>
      %79 = vector.broadcast %74 : vector<1x256xf32> to vector<16x256xf32>
      %80 = arith.mulf %78, %79 : vector<16x256xf32>
      %81 = arith.addf %73, %80 : vector<16x256xf32>
      %c7 = arith.constant 7 : index
      %c0_65 = arith.constant 0 : index
      %82 = vector.load %arg1[%c7, %c0_65] : memref<9x256xf32, #tpu.memory_space<vmem>>, vector<1x256xf32>
      %c2_i32_66 = arith.constant 2 : i32
      %83 = arith.addi %arg8, %c2_i32_66 : i32
      %c1_67 = arith.constant 1 : index
      %84 = arith.index_cast %83 : i32 to index
      %c0_68 = arith.constant 0 : index
      %c0_69 = arith.constant 0 : index
      %85 = vector.load %arg5[%c1_67, %84, %c0_68, %c0_69] : memref<3x16x16x256xf32, #tpu.memory_space<vmem>>, vector<1x1x16x256xf32>
      %86 = vector.shape_cast %85 : vector<1x1x16x256xf32> to vector<16x256xf32>
      %87 = vector.broadcast %82 : vector<1x256xf32> to vector<16x256xf32>
      %88 = arith.mulf %86, %87 : vector<16x256xf32>
      %89 = arith.addf %81, %88 : vector<16x256xf32>
      %c8 = arith.constant 8 : index
      %c0_70 = arith.constant 0 : index
      %90 = vector.load %arg1[%c8, %c0_70] : memref<9x256xf32, #tpu.memory_space<vmem>>, vector<1x256xf32>
      %c2_i32_71 = arith.constant 2 : i32
      %91 = arith.addi %arg8, %c2_i32_71 : i32
      %c2_72 = arith.constant 2 : index
      %92 = arith.index_cast %91 : i32 to index
      %c0_73 = arith.constant 0 : index
      %c0_74 = arith.constant 0 : index
      %93 = vector.load %arg5[%c2_72, %92, %c0_73, %c0_74] : memref<3x16x16x256xf32, #tpu.memory_space<vmem>>, vector<1x1x16x256xf32>
      %94 = vector.shape_cast %93 : vector<1x1x16x256xf32> to vector<16x256xf32>
      %95 = vector.broadcast %90 : vector<1x256xf32> to vector<16x256xf32>
      %96 = arith.mulf %94, %95 : vector<16x256xf32>
      %97 = arith.addf %89, %96 : vector<16x256xf32>
      %98 = arith.index_cast %arg8 : i32 to index
      %c0_75 = arith.constant 0 : index
      %c0_76 = arith.constant 0 : index
      %99 = vector.load %arg4[%98, %c0_75, %c0_76] : memref<14x16x256xf32, #tpu.memory_space<vmem>>, vector<1x16x256xf32>
      %100 = vector.shape_cast %99 : vector<1x16x256xf32> to vector<16x256xf32>
      %101 = vector.shape_cast %97 : vector<16x256xf32> to vector<1x16x256xf32>
      tpu.vector_store %arg4[%98, %c0_75, %c0_76], %101 {strides = array<i32>} : memref<14x16x256xf32, #tpu.memory_space<vmem>>, vector<1x16x256xf32>,
      %c0_77 = arith.constant 0 : index
      %c0_78 = arith.constant 0 : index
      %102 = vector.load %arg6[%c0_77, %c0_78] : memref<1x256xf32, #tpu.memory_space<vmem>>, vector<1x256xf32>
      %cst_79 = arith.constant dense<0.000000e+00> : vector<256xf32>
      %103 = vector.multi_reduction <add>, %97, %cst_79 [0] : vector<16x256xf32> to vector<256xf32>
      %104 = vector.shape_cast %103 : vector<256xf32> to vector<1x256xf32>
      %105 = arith.addf %102, %104 : vector<1x256xf32>
      %c0_80 = arith.constant 0 : index
      %c0_81 = arith.constant 0 : index
      %106 = vector.load %arg6[%c0_80, %c0_81] : memref<1x256xf32, #tpu.memory_space<vmem>>, vector<1x256xf32>
      tpu.vector_store %arg6[%c0_80, %c0_81], %105 {strides = array<i32>} : memref<1x256xf32, #tpu.memory_space<vmem>>, vector<1x256xf32>,
      %c0_82 = arith.constant 0 : index
      %c0_83 = arith.constant 0 : index
      %107 = vector.load %arg7[%c0_82, %c0_83] : memref<1x256xf32, #tpu.memory_space<vmem>>, vector<1x256xf32>
      %108 = arith.mulf %97, %97 : vector<16x256xf32>
      %cst_84 = arith.constant dense<0.000000e+00> : vector<256xf32>
      %109 = vector.multi_reduction <add>, %108, %cst_84 [0] : vector<16x256xf32> to vector<256xf32>
      %110 = vector.shape_cast %109 : vector<256xf32> to vector<1x256xf32>
      %111 = arith.addf %107, %110 : vector<1x256xf32>
      %c0_85 = arith.constant 0 : index
      %c0_86 = arith.constant 0 : index
      %112 = vector.load %arg7[%c0_85, %c0_86] : memref<1x256xf32, #tpu.memory_space<vmem>>, vector<1x256xf32>
      tpu.vector_store %arg7[%c0_85, %c0_86], %111 {strides = array<i32>} : memref<1x256xf32, #tpu.memory_space<vmem>>, vector<1x256xf32>,
    }
    %c14_i32_13 = arith.constant 14 : i32
    %c0_14 = arith.constant 0 : index
    %c0_15 = arith.constant 0 : index
    %8 = vector.load %arg6[%c0_14, %c0_15] : memref<1x256xf32, #tpu.memory_space<vmem>>, vector<1x256xf32>
    %cst_16 = arith.constant 0.00510204071 : f32
    %9 = vector.broadcast %cst_16 : f32 to vector<1x256xf32>
    %10 = arith.mulf %8, %9 : vector<1x256xf32>
    %c0_17 = arith.constant 0 : index
    %c0_18 = arith.constant 0 : index
    %11 = vector.load %arg7[%c0_17, %c0_18] : memref<1x256xf32, #tpu.memory_space<vmem>>, vector<1x256xf32>
    %cst_19 = arith.constant 0.00510204071 : f32
    %12 = vector.broadcast %cst_19 : f32 to vector<1x256xf32>
    %13 = arith.mulf %11, %12 : vector<1x256xf32>
    %14 = arith.mulf %10, %10 : vector<1x256xf32>
    %15 = arith.subf %13, %14 : vector<1x256xf32>
    %c0_20 = arith.constant 0 : index
    %c0_21 = arith.constant 0 : index
    %16 = vector.load %arg2[%c0_20, %c0_21] : memref<1x256xf32, #tpu.memory_space<vmem>>, vector<1x256xf32>
    %cst_22 = arith.constant 9.99999974E-6 : f32
    %17 = vector.broadcast %cst_22 : f32 to vector<1x256xf32>
    %18 = arith.addf %15, %17 : vector<1x256xf32>
    %19 = math.rsqrt %18 : vector<1x256xf32>
    %20 = arith.mulf %16, %19 : vector<1x256xf32>
    %c0_23 = arith.constant 0 : index
    %c0_24 = arith.constant 0 : index
    %21 = vector.load %arg3[%c0_23, %c0_24] : memref<1x256xf32, #tpu.memory_space<vmem>>, vector<1x256xf32>
    %22 = arith.mulf %10, %20 : vector<1x256xf32>
    %23 = arith.subf %21, %22 : vector<1x256xf32>
    %c0_i32_25 = arith.constant 0 : i32
    %c14_i32_26 = arith.constant 14 : i32
    %24 = arith.addi %c0_i32_25, %c14_i32_26 : i32
    %c1_i32_27 = arith.constant 1 : i32
    scf.for %arg8 = %c0_i32_25 to %24 step %c1_i32_27  : i32 {
      %25 = arith.index_cast %arg8 : i32 to index
      %c0_29 = arith.constant 0 : index
      %c0_30 = arith.constant 0 : index
      %26 = vector.load %arg4[%25, %c0_29, %c0_30] : memref<14x16x256xf32, #tpu.memory_space<vmem>>, vector<1x16x256xf32>
      %27 = vector.shape_cast %26 : vector<1x16x256xf32> to vector<16x256xf32>
      %28 = vector.broadcast %20 : vector<1x256xf32> to vector<16x256xf32>
      %29 = arith.mulf %27, %28 : vector<16x256xf32>
      %30 = vector.broadcast %23 : vector<1x256xf32> to vector<16x256xf32>
      %31 = arith.addf %29, %30 : vector<16x256xf32>
      %32 = arith.index_cast %arg8 : i32 to index
      %c0_31 = arith.constant 0 : index
      %c0_32 = arith.constant 0 : index
      %33 = vector.load %arg4[%32, %c0_31, %c0_32] : memref<14x16x256xf32, #tpu.memory_space<vmem>>, vector<1x16x256xf32>
      %34 = vector.shape_cast %33 : vector<1x16x256xf32> to vector<16x256xf32>
      %35 = vector.shape_cast %31 : vector<16x256xf32> to vector<1x16x256xf32>
      tpu.vector_store %arg4[%32, %c0_31, %c0_32], %35 {strides = array<i32>} : memref<14x16x256xf32, #tpu.memory_space<vmem>>, vector<1x16x256xf32>,
    }
    %c14_i32_28 = arith.constant 14 : i32
    return
  }
}

</mosaic_0001>

<llo_original>
// kernel: dwconv_bn.1
$region0: #{dwconv_bn.1}
  #allocation0 [shape = 'u32[]', space=smem, size = 0x4, offset = 0x4, fixed_abs, tag = 'smem constant byte address 0x4 - core index']
  #allocation1 [shape = 'u32[72,128]{1,0:T(1,128)}', space=vmem, size = 0x9000, scoped, tag = 'internal scratch']
  #allocation2 [shape = 'f32[3,16,16,256]{3,2,1,0:T(8,128)}', space=vmem, size = 0xc0000, scoped, tag = 'scratch operand']
  #allocation3 [shape = 'f32[1,256]{1,0:T(1,128)}', space=vmem, size = 0x400, scoped, tag = 'scratch operand']
  #allocation4 [shape = 'f32[1,256]{1,0:T(1,128)}', space=vmem, size = 0x400, scoped, tag = 'scratch operand']
  %s0 = inlined_call_operand.vmem [shape: f32[14,14,256], index: 0, kind: input, shape index: {}]
  %s1 = inlined_call_operand.vmem [shape: f32[9,256], index: 1, kind: input, shape index: {}]
  %s2 = inlined_call_operand.vmem [shape: f32[1,256], index: 2, kind: input, shape index: {}]
  %s3 = inlined_call_operand.vmem [shape: f32[1,256], index: 3, kind: input, shape index: {}]
  %s4 = inlined_call_operand.vmem [shape: f32[14,16,256], index: 4, kind: output, shape index: {}]
  %s5 = sld [smem:[#allocation0]]
  $region47: #{dwconv_bn.1} parent=0
    _
  %s7 = ssub.s32 1, %s5
  %s8 = scalar_select 0, %s7, %s5
  // Predicated region
  $region2: #{dwconv_bn.1} parent=0 // pred_check
    _
  $region3: #{dwconv_bn.1} parent=0 // pred_check_branch
    %10 = sbr.rel (0) target = $region5
  $region4: #{dwconv_bn.1} parent=0 // pred_region
    _
  $region5: #{dwconv_bn.1} parent=0 // pred_fallthru
    _
  // Predicated region
  $region6: #{dwconv_bn.1} parent=0 // pred_check
    _
  $region7: #{dwconv_bn.1} parent=0 // pred_check_branch
    %12 = sbr.rel (0) target = $region9
  $region8: #{dwconv_bn.1} parent=0 // pred_region
    _
  $region9: #{dwconv_bn.1} parent=0 // pred_fallthru
    _
  // Predicated region
  $region10: #{dwconv_bn.1} parent=0 // pred_check
    _
  $region11: #{dwconv_bn.1} parent=0 // pred_check_branch
    %14 = sbr.rel (0) target = $region13
  $region12: #{dwconv_bn.1} parent=0 // pred_region
    _
  $region13: #{dwconv_bn.1} parent=0 // pred_fallthru
    _
  // Predicated region
  $region14: #{dwconv_bn.1} parent=0 // pred_check
    _
  $region15: #{dwconv_bn.1} parent=0 // pred_check_branch
    %16 = sbr.rel (0) target = $region17
  $region16: #{dwconv_bn.1} parent=0 // pred_region
    _
  $region17: #{dwconv_bn.1} parent=0 // pred_fallthru
    _
  %17 = vst [vmem:[#allocation2] sm:$0xff] 0.0
  %18 = vst [vmem:[#allocation2 + $0x8] sm:$0xff] 0.0
  %19 = vst [vmem:[#allocation2 + $0x10] sm:$0xff] 0.0
  %20 = vst [vmem:[#allocation2 + $0x18] sm:$0xff] 0.0
  %21 = vst [vmem:[#allocation2 + $0x20] sm:$0xff] 0.0
  %22 = vst [vmem:[#allocation2 + $0x28] sm:$0xff] 0.0
  %23 = vst [vmem:[#allocation2 + $0x30] sm:$0xff] 0.0
  %24 = vst [vmem:[#allocation2 + $0x38] sm:$0xff] 0.0
  %25 = vst [vmem:[#allocation2 + $0x40] sm:$0xff] 0.0
  %26 = vst [vmem:[#allocation2 + $0x48] sm:$0xff] 0.0
  %27 = vst [vmem:[#allocation2 + $0x50] sm:$0xff] 0.0
  %28 = vst [vmem:[#allocation2 + $0x58] sm:$0xff] 0.0
  %29 = vst [vmem:[#allocation2 + $0x60] sm:$0xff] 0.0
  %30 = vst [vmem:[#allocation2 + $0x68] sm:$0xff] 0.0
  %31 = vst [vmem:[#allocation2 + $0x70] sm:$0xff] 0.0
  %32 = vst [vmem:[#allocation2 + $0x78] sm:$0xff] 0.0
  %33 = vst [vmem:[#allocation2 + $0x80] sm:$0xff] 0.0
  %34 = vst [vmem:[#allocation2 + $0x88] sm:$0xff] 0.0
  %35 = vst [vmem:[#allocation2 + $0x90] sm:$0xff] 0.0
  %36 = vst [vmem:[#allocation2 + $0x98] sm:$0xff] 0.0
  %37 = vst [vmem:[#allocation2 + $0xa0] sm:$0xff] 0.0
  %38 = vst [vmem:[#allocation2 + $0xa8] sm:$0xff] 0.0
  %39 = vst [vmem:[#allocation2 + $0xb0] sm:$0xff] 0.0
  %40 = vst [vmem:[#allocation2 + $0xb8] sm:$0xff] 0.0
  %41 = vst [vmem:[#allocation2 + $0xc0] sm:$0xff] 0.0
  %42 = vst [vmem:[#allocation2 + $0xc8] sm:$0xff] 0.0
  %43 = vst [vmem:[#allocation2 + $0xd0] sm:$0xff] 0.0
  %44 = vst [vmem:[#allocation2 + $0xd8] sm:$0xff] 0.0
  %45 = vst [vmem:[#allocation2 + $0xe0] sm:$0xff] 0.0
  %46 = vst [vmem:[#allocation2 + $0xe8] sm:$0xff] 0.0
  %47 = vst [vmem:[#allocation2 + $0xf0] sm:$0xff] 0.0
  %48 = vst [vmem:[#allocation2 + $0xf8] sm:$0xff] 0.0
  %49 = vst [vmem:[#allocation2 + $0x100] sm:$0xff] 0.0
  %50 = vst [vmem:[#allocation2 + $0x108] sm:$0xff] 0.0
  %51 = vst [vmem:[#allocation2 + $0x110] sm:$0xff] 0.0
  %52 = vst [vmem:[#allocation2 + $0x118] sm:$0xff] 0.0
  %53 = vst [vmem:[#allocation2 + $0x120] sm:$0xff] 0.0
  %54 = vst [vmem:[#allocation2 + $0x128] sm:$0xff] 0.0
  %55 = vst [vmem:[#allocation2 + $0x130] sm:$0xff] 0.0
  %56 = vst [vmem:[#allocation2 + $0x138] sm:$0xff] 0.0
  %57 = vst [vmem:[#allocation2 + $0x140] sm:$0xff] 0.0
  %58 = vst [vmem:[#allocation2 + $0x148] sm:$0xff] 0.0
  %59 = vst [vmem:[#allocation2 + $0x150] sm:$0xff] 0.0
  %60 = vst [vmem:[#allocation2 + $0x158] sm:$0xff] 0.0
  %61 = vst [vmem:[#allocation2 + $0x160] sm:$0xff] 0.0
  %62 = vst [vmem:[#allocation2 + $0x168] sm:$0xff] 0.0
  %63 = vst [vmem:[#allocation2 + $0x170] sm:$0xff] 0.0
  %64 = vst [vmem:[#allocation2 + $0x178] sm:$0xff] 0.0
  %65 = vst [vmem:[#allocation2 + $0x180] sm:$0xff] 0.0
  %66 = vst [vmem:[#allocation2 + $0x188] sm:$0xff] 0.0
  %67 = vst [vmem:[#allocation2 + $0x190] sm:$0xff] 0.0
  %68 = vst [vmem:[#allocation2 + $0x198] sm:$0xff] 0.0
  %69 = vst [vmem:[#allocation2 + $0x1a0] sm:$0xff] 0.0
  %70 = vst [vmem:[#allocation2 + $0x1a8] sm:$0xff] 0.0
  %71 = vst [vmem:[#allocation2 + $0x1b0] sm:$0xff] 0.0
  %72 = vst [vmem:[#allocation2 + $0x1b8] sm:$0xff] 0.0
  %73 = vst [vmem:[#allocation2 + $0x1c0] sm:$0xff] 0.0
  %74 = vst [vmem:[#allocation2 + $0x1c8] sm:$0xff] 0.0
  %75 = vst [vmem:[#allocation2 + $0x1d0] sm:$0xff] 0.0
  %76 = vst [vmem:[#allocation2 + $0x1d8] sm:$0xff] 0.0
  %77 = vst [vmem:[#allocation2 + $0x1e0] sm:$0xff] 0.0
  %78 = vst [vmem:[#allocation2 + $0x1e8] sm:$0xff] 0.0
  %79 = vst [vmem:[#allocation2 + $0x1f0] sm:$0xff] 0.0
  %80 = vst [vmem:[#allocation2 + $0x1f8] sm:$0xff] 0.0
  %81 = vst [vmem:[#allocation2 + $0x200] sm:$0xff] 0.0
  %82 = vst [vmem:[#allocation2 + $0x208] sm:$0xff] 0.0
  %83 = vst [vmem:[#allocation2 + $0x210] sm:$0xff] 0.0
  %84 = vst [vmem:[#allocation2 + $0x218] sm:$0xff] 0.0
  %85 = vst [vmem:[#allocation2 + $0x220] sm:$0xff] 0.0
  %86 = vst [vmem:[#allocation2 + $0x228] sm:$0xff] 0.0
  %87 = vst [vmem:[#allocation2 + $0x230] sm:$0xff] 0.0
  %88 = vst [vmem:[#allocation2 + $0x238] sm:$0xff] 0.0
  %89 = vst [vmem:[#allocation2 + $0x240] sm:$0xff] 0.0
  %90 = vst [vmem:[#allocation2 + $0x248] sm:$0xff] 0.0
  %91 = vst [vmem:[#allocation2 + $0x250] sm:$0xff] 0.0
  %92 = vst [vmem:[#allocation2 + $0x258] sm:$0xff] 0.0
  %93 = vst [vmem:[#allocation2 + $0x260] sm:$0xff] 0.0
  %94 = vst [vmem:[#allocation2 + $0x268] sm:$0xff] 0.0
  %95 = vst [vmem:[#allocation2 + $0x270] sm:$0xff] 0.0
  %96 = vst [vmem:[#allocation2 + $0x278] sm:$0xff] 0.0
  %97 = vst [vmem:[#allocation2 + $0x280] sm:$0xff] 0.0
  %98 = vst [vmem:[#allocation2 + $0x288] sm:$0xff] 0.0
  %99 = vst [vmem:[#allocation2 + $0x290] sm:$0xff] 0.0
  %100 = vst [vmem:[#allocation2 + $0x298] sm:$0xff] 0.0
  %101 = vst [vmem:[#allocation2 + $0x2a0] sm:$0xff] 0.0
  %102 = vst [vmem:[#allocation2 + $0x2a8] sm:$0xff] 0.0
  %103 = vst [vmem:[#allocation2 + $0x2b0] sm:$0xff] 0.0
  %104 = vst [vmem:[#allocation2 + $0x2b8] sm:$0xff] 0.0
  %105 = vst [vmem:[#allocation2 + $0x2c0] sm:$0xff] 0.0
  %106 = vst [vmem:[#allocation2 + $0x2c8] sm:$0xff] 0.0
  %107 = vst [vmem:[#allocation2 + $0x2d0] sm:$0xff] 0.0
  %108 = vst [vmem:[#allocation2 + $0x2d8] sm:$0xff] 0.0
  %109 = vst [vmem:[#allocation2 + $0x2e0] sm:$0xff] 0.0
  %110 = vst [vmem:[#allocation2 + $0x2e8] sm:$0xff] 0.0
  %111 = vst [vmem:[#allocation2 + $0x2f0] sm:$0xff] 0.0
  %112 = vst [vmem:[#allocation2 + $0x2f8] sm:$0xff] 0.0
  %113 = vst [vmem:[#allocation2 + $0x300] sm:$0xff] 0.0
  %114 = vst [vmem:[#allocation2 + $0x308] sm:$0xff] 0.0
  %115 = vst [vmem:[#allocation2 + $0x310] sm:$0xff] 0.0
  %116 = vst [vmem:[#allocation2 + $0x318] sm:$0xff] 0.0
  %117 = vst [vmem:[#allocation2 + $0x320] sm:$0xff] 0.0
  %118 = vst [vmem:[#allocation2 + $0x328] sm:$0xff] 0.0
  %119 = vst [vmem:[#allocation2 + $0x330] sm:$0xff] 0.0
  %120 = vst [vmem:[#allocation2 + $0x338] sm:$0xff] 0.0
  %121 = vst [vmem:[#allocation2 + $0x340] sm:$0xff] 0.0
  %122 = vst [vmem:[#allocation2 + $0x348] sm:$0xff] 0.0
  %123 = vst [vmem:[#allocation2 + $0x350] sm:$0xff] 0.0
  %124 = vst [vmem:[#allocation2 + $0x358] sm:$0xff] 0.0
  %125 = vst [vmem:[#allocation2 + $0x360] sm:$0xff] 0.0
  %126 = vst [vmem:[#allocation2 + $0x368] sm:$0xff] 0.0
  %127 = vst [vmem:[#allocation2 + $0x370] sm:$0xff] 0.0
  %128 = vst [vmem:[#allocation2 + $0x378] sm:$0xff] 0.0
  %129 = vst [vmem:[#allocation2 + $0x380] sm:$0xff] 0.0
  %130 = vst [vmem:[#allocation2 + $0x388] sm:$0xff] 0.0
  %131 = vst [vmem:[#allocation2 + $0x390] sm:$0xff] 0.0
  %132 = vst [vmem:[#allocation2 + $0x398] sm:$0xff] 0.0
  %133 = vst [vmem:[#allocation2 + $0x3a0] sm:$0xff] 0.0
  %134 = vst [vmem:[#allocation2 + $0x3a8] sm:$0xff] 0.0
  %135 = vst [vmem:[#allocation2 + $0x3b0] sm:$0xff] 0.0
  %136 = vst [vmem:[#allocation2 + $0x3b8] sm:$0xff] 0.0
  %137 = vst [vmem:[#allocation2 + $0x3c0] sm:$0xff] 0.0
  %138 = vst [vmem:[#allocation2 + $0x3c8] sm:$0xff] 0.0
  %139 = vst [vmem:[#allocation2 + $0x3d0] sm:$0xff] 0.0
  %140 = vst [vmem:[#allocation2 + $0x3d8] sm:$0xff] 0.0
  %141 = vst [vmem:[#allocation2 + $0x3e0] sm:$0xff] 0.0
  %142 = vst [vmem:[#allocation2 + $0x3e8] sm:$0xff] 0.0
  %143 = vst [vmem:[#allocation2 + $0x3f0] sm:$0xff] 0.0
  %144 = vst [vmem:[#allocation2 + $0x3f8] sm:$0xff] 0.0
  %145 = vst [vmem:[#allocation2 + $0x400] sm:$0xff] 0.0
  %146 = vst [vmem:[#allocation2 + $0x408] sm:$0xff] 0.0
  %147 = vst [vmem:[#allocation2 + $0x410] sm:$0xff] 0.0
  %148 = vst [vmem:[#allocation2 + $0x418] sm:$0xff] 0.0
  %149 = vst [vmem:[#allocation2 + $0x420] sm:$0xff] 0.0
  %150 = vst [vmem:[#allocation2 + $0x428] sm:$0xff] 0.0
  %151 = vst [vmem:[#allocation2 + $0x430] sm:$0xff] 0.0
  %152 = vst [vmem:[#allocation2 + $0x438] sm:$0xff] 0.0
  %153 = vst [vmem:[#allocation2 + $0x440] sm:$0xff] 0.0
  %154 = vst [vmem:[#allocation2 + $0x448] sm:$0xff] 0.0
  %155 = vst [vmem:[#allocation2 + $0x450] sm:$0xff] 0.0
  %156 = vst [vmem:[#allocation2 + $0x458] sm:$0xff] 0.0
  %157 = vst [vmem:[#allocation2 + $0x460] sm:$0xff] 0.0
  %158 = vst [vmem:[#allocation2 + $0x468] sm:$0xff] 0.0
  %159 = vst [vmem:[#allocation2 + $0x470] sm:$0xff] 0.0
  %160 = vst [vmem:[#allocation2 + $0x478] sm:$0xff] 0.0
  %161 = vst [vmem:[#allocation2 + $0x480] sm:$0xff] 0.0
  %162 = vst [vmem:[#allocation2 + $0x488] sm:$0xff] 0.0
  %163 = vst [vmem:[#allocation2 + $0x490] sm:$0xff] 0.0
  %164 = vst [vmem:[#allocation2 + $0x498] sm:$0xff] 0.0
  %165 = vst [vmem:[#allocation2 + $0x4a0] sm:$0xff] 0.0
  %166 = vst [vmem:[#allocation2 + $0x4a8] sm:$0xff] 0.0
  %167 = vst [vmem:[#allocation2 + $0x4b0] sm:$0xff] 0.0
  %168 = vst [vmem:[#allocation2 + $0x4b8] sm:$0xff] 0.0
  %169 = vst [vmem:[#allocation2 + $0x4c0] sm:$0xff] 0.0
  %170 = vst [vmem:[#allocation2 + $0x4c8] sm:$0xff] 0.0
  %171 = vst [vmem:[#allocation2 + $0x4d0] sm:$0xff] 0.0
  %172 = vst [vmem:[#allocation2 + $0x4d8] sm:$0xff] 0.0
  %173 = vst [vmem:[#allocation2 + $0x4e0] sm:$0xff] 0.0
  %174 = vst [vmem:[#allocation2 + $0x4e8] sm:$0xff] 0.0
  %175 = vst [vmem:[#allocation2 + $0x4f0] sm:$0xff] 0.0
  %176 = vst [vmem:[#allocation2 + $0x4f8] sm:$0xff] 0.0
  %177 = vst [vmem:[#allocation2 + $0x500] sm:$0xff] 0.0
  %178 = vst [vmem:[#allocation2 + $0x508] sm:$0xff] 0.0
  %179 = vst [vmem:[#allocation2 + $0x510] sm:$0xff] 0.0
  %180 = vst [vmem:[#allocation2 + $0x518] sm:$0xff] 0.0
  %181 = vst [vmem:[#allocation2 + $0x520] sm:$0xff] 0.0
  %182 = vst [vmem:[#allocation2 + $0x528] sm:$0xff] 0.0
  %183 = vst [vmem:[#allocation2 + $0x530] sm:$0xff] 0.0
  %184 = vst [vmem:[#allocation2 + $0x538] sm:$0xff] 0.0
  %185 = vst [vmem:[#allocation2 + $0x540] sm:$0xff] 0.0
  %186 = vst [vmem:[#allocation2 + $0x548] sm:$0xff] 0.0
  %187 = vst [vmem:[#allocation2 + $0x550] sm:$0xff] 0.0
  %188 = vst [vmem:[#allocation2 + $0x558] sm:$0xff] 0.0
  %189 = vst [vmem:[#allocation2 + $0x560] sm:$0xff] 0.0
  %190 = vst [vmem:[#allocation2 + $0x568] sm:$0xff] 0.0
  %191 = vst [vmem:[#allocation2 + $0x570] sm:$0xff] 0.0
  %192 = vst [vmem:[#allocation2 + $0x578] sm:$0xff] 0.0
  %193 = vst [vmem:[#allocation2 + $0x580] sm:$0xff] 0.0
  %194 = vst [vmem:[#allocation2 + $0x588] sm:$0xff] 0.0
  %195 = vst [vmem:[#allocation2 + $0x590] sm:$0xff] 0.0
  %196 = vst [vmem:[#allocation2 + $0x598] sm:$0xff] 0.0
  %197 = vst [vmem:[#allocation2 + $0x5a0] sm:$0xff] 0.0
  %198 = vst [vmem:[#allocation2 + $0x5a8] sm:$0xff] 0.0
  %199 = vst [vmem:[#allocation2 + $0x5b0] sm:$0xff] 0.0
  %200 = vst [vmem:[#allocation2 + $0x5b8] sm:$0xff] 0.0
  %201 = vst [vmem:[#allocation2 + $0x5c0] sm:$0xff] 0.0
  %202 = vst [vmem:[#allocation2 + $0x5c8] sm:$0xff] 0.0
  %203 = vst [vmem:[#allocation2 + $0x5d0] sm:$0xff] 0.0
  %204 = vst [vmem:[#allocation2 + $0x5d8] sm:$0xff] 0.0
  %205 = vst [vmem:[#allocation2 + $0x5e0] sm:$0xff] 0.0
  %206 = vst [vmem:[#allocation2 + $0x5e8] sm:$0xff] 0.0
  %207 = vst [vmem:[#allocation2 + $0x5f0] sm:$0xff] 0.0
  %208 = vst [vmem:[#allocation2 + $0x5f8] sm:$0xff] 0.0
  %v209 = vlaneseq
  %vm210 = vcmp.ge.s32.totalorder %v209, 0
  %vm211 = vcmp.lt.s32.totalorder %v209, 256
  %vm212 = vmand %vm210, %vm211
  %213 = vst.msk [vmem:[#allocation3] sm:$0x3] %vm212, 0.0
  %214 = vst.msk [vmem:[#allocation4] sm:$0x3] %vm212, 0.0
  loop: start=0, step=1, limit=14
  $region18: #{dwconv_bn.1} parent=0 // loop_pre_header
    _
  $region19: #{dwconv_bn.1} parent=0 // loop_header
    %s216 = sphi 0, %s220
    %p217 = scmp.ge.s32.totalorder %s216, 14
  $region20: #{dwconv_bn.1} parent=0 // loop_header_branch
    %219 = sbr.rel (%p217) target = $region24
  $region21: #{dwconv_bn.1} parent=0 // loop_body
    %s221 = smul.u32 %s216, 4
    %s222 = smul.addr %s221, 8
    %s223 = scalar_lea.vmem %s0, %s222
    %v224 = vld [vmem:[%s223] sm:$0xff]
    %v225 = vld [vmem:[%s223 + $0x8] sm:$0xff]
    %v226 = vld [vmem:[%s223 + $0x10] sm:$0x3f]
    %v227 = vld [vmem:[%s223 + $0x18] sm:$0x3f]
    %s228 = sadd.s32 %s216, 1
    %s229 = smul.u32 %s228, 4
    %s230 = sadd.s32 %s229, 64
    %s231 = smul.addr %s230, 8
    %s232 = scalar_lea.vmem [#allocation2], %s231
    %233 = vst [vmem:[%s232] sm:$0xff] %v224
    %234 = vst [vmem:[%s232 + $0x8] sm:$0xff] %v225
    %235 = vst [vmem:[%s232 + $0x10] sm:$0x3f] %v226
    %236 = vst [vmem:[%s232 + $0x18] sm:$0x3f] %v227
    %v237 = vld [vmem:[%s223] sm:$0xfe]
    %v238 = vld [vmem:[%s223 + $0x8] sm:$0xfe]
    %v239 = vld [vmem:[%s223 + $0x10] sm:$0x3f]
    %v240 = vld [vmem:[%s223 + $0x18] sm:$0x3f]
    %vm245 = vcmask 1046528
    %v246 = vrot.slane %v237, 1
    %v247 = vrot.slane %v239, 1
    %v248 = vsel %vm245, %v246, %v247
    %v249 = vrot.slane %v238, 1
    %v250 = vrot.slane %v240, 1
    %v251 = vsel %vm245, %v249, %v250
    %s256 = sadd.s32 %s229, 128
    %s257 = smul.addr %s256, 8
    %s258 = scalar_lea.vmem [#allocation2], %s257
    %259 = vst [vmem:[%s258] sm:$0xff] %v248
    %260 = vst [vmem:[%s258 + $0x8] sm:$0xff] %v251
    %261 = vst [vmem:[%s258 + $0x10] sm:$0x1f] %v247
    %262 = vst [vmem:[%s258 + $0x18] sm:$0x1f] %v250
    %v263 = vld [vmem:[%s223] sm:$0xff]
    %v264 = vld [vmem:[%s223 + $0x8] sm:$0xff]
    %v265 = vld [vmem:[%s223 + $0x10] sm:$0x1f]
    %v266 = vld [vmem:[%s223 + $0x18] sm:$0x1f]
    %vm271 = vcmask 1040384
    %v272 = vrot.slane %v263, 7
    %v273 = vrot.slane %v264, 7
    %v274 = vrot.slane %v265, 7
    %v275 = vsel %vm271, %v272, %v274
    %v276 = vrot.slane %v266, 7
    %v277 = vsel %vm271, %v273, %v276
    %s282 = smul.addr %s229, 8
    %s283 = scalar_lea.vmem [#allocation2], %s282
    %284 = vst [vmem:[%s283] sm:$0xfe] %v272
    %285 = vst [vmem:[%s283 + $0x8] sm:$0xfe] %v273
    %286 = vst [vmem:[%s283 + $0x10] sm:$0x3f] %v275
    %287 = vst [vmem:[%s283 + $0x18] sm:$0x3f] %v277
  $region22: #{dwconv_bn.1} parent=0 // loop_footer
    %s220 = sadd.s32 1, %s216
  $region23: #{dwconv_bn.1} parent=0 // loop_footer_branch
    %215 = sbr.rel target = $region19
  $region24: #{dwconv_bn.1} parent=0 // loop_exit
    _
  loop: start=0, step=1, limit=14
  $region25: #{dwconv_bn.1} parent=0 // loop_pre_header
    _
  $region26: #{dwconv_bn.1} parent=0 // loop_header
    %s289 = sphi 0, %s293
    %p290 = scmp.ge.s32.totalorder %s289, 14
  $region27: #{dwconv_bn.1} parent=0 // loop_header_branch
    %292 = sbr.rel (%p290) target = $region31
  $region28: #{dwconv_bn.1} parent=0 // loop_body
    %v294 = vld [vmem:[%s1] ss:$8 sm:$0x3]
    %s295 = smul.u32 %s289, 4
    %s296 = smul.addr %s295, 8
    %s297 = scalar_lea.vmem [#allocation2], %s296
    %v298 = vld [vmem:[%s297] sm:$0xff]
    %v299 = vld [vmem:[%s297 + $0x8] sm:$0xff]
    %v300 = vld [vmem:[%s297 + $0x10] sm:$0xff]
    %v301 = vld [vmem:[%s297 + $0x18] sm:$0xff]
    %v303 = vperm.slane %v294, 0
    %v304 = vperm.slane %v294, 1
    %v307 = vmul.f32 %v298, %v303
    %v308 = vmul.f32 %v299, %v304
    %v309 = vmul.f32 %v300, %v303
    %v310 = vmul.f32 %v301, %v304
    %v311 = vadd.f32 %v307, 0.0
    %v312 = vadd.f32 %v308, 0.0
    %v313 = vadd.f32 %v309, 0.0
    %v314 = vadd.f32 %v310, 0.0
    %s315 = scalar_lea.vmem %s1, 1
    %v316 = vld [vmem:[%s315] ss:$8 sm:$0x3]
    %s317 = sadd.s32 %s295, 64
    %s318 = smul.addr %s317, 8
    %s319 = scalar_lea.vmem [#allocation2], %s318
    %v320 = vld [vmem:[%s319] sm:$0xff]
    %v321 = vld [vmem:[%s319 + $0x8] sm:$0xff]
    %v322 = vld [vmem:[%s319 + $0x10] sm:$0xff]
    %v323 = vld [vmem:[%s319 + $0x18] sm:$0xff]
    %v325 = vperm.slane %v316, 0
    %v326 = vperm.slane %v316, 1
    %v329 = vmul.f32 %v320, %v325
    %v330 = vmul.f32 %v321, %v326
    %v331 = vmul.f32 %v322, %v325
    %v332 = vmul.f32 %v323, %v326
    %v333 = vadd.f32 %v311, %v329
    %v334 = vadd.f32 %v312, %v330
    %v335 = vadd.f32 %v313, %v331
    %v336 = vadd.f32 %v314, %v332
    %s337 = scalar_lea.vmem %s1, 2
    %v338 = vld [vmem:[%s337] ss:$8 sm:$0x3]
    %s339 = sadd.s32 %s295, 128
    %s340 = smul.addr %s339, 8
    %s341 = scalar_lea.vmem [#allocation2], %s340
    %v342 = vld [vmem:[%s341] sm:$0xff]
    %v343 = vld [vmem:[%s341 + $0x8] sm:$0xff]
    %v344 = vld [vmem:[%s341 + $0x10] sm:$0xff]
    %v345 = vld [vmem:[%s341 + $0x18] sm:$0xff]
    %v347 = vperm.slane %v338, 0
    %v348 = vperm.slane %v338, 1
    %v351 = vmul.f32 %v342, %v347
    %v352 = vmul.f32 %v343, %v348
    %v353 = vmul.f32 %v344, %v347
    %v354 = vmul.f32 %v345, %v348
    %v355 = vadd.f32 %v333, %v351
    %v356 = vadd.f32 %v334, %v352
    %v357 = vadd.f32 %v335, %v353
    %v358 = vadd.f32 %v336, %v354
    %s359 = scalar_lea.vmem %s1, 3
    %v360 = vld [vmem:[%s359] ss:$8 sm:$0x3]
    %s361 = sadd.s32 %s289, 1
    %s362 = smul.u32 %s361, 4
    %s363 = smul.addr %s362, 8
    %s364 = scalar_lea.vmem [#allocation2], %s363
    %v365 = vld [vmem:[%s364] sm:$0xff]
    %v366 = vld [vmem:[%s364 + $0x8] sm:$0xff]
    %v367 = vld [vmem:[%s364 + $0x10] sm:$0xff]
    %v368 = vld [vmem:[%s364 + $0x18] sm:$0xff]
    %v370 = vperm.slane %v360, 0
    %v371 = vperm.slane %v360, 1
    %v374 = vmul.f32 %v365, %v370
    %v375 = vmul.f32 %v366, %v371
    %v376 = vmul.f32 %v367, %v370
    %v377 = vmul.f32 %v368, %v371
    %v378 = vadd.f32 %v355, %v374
    %v379 = vadd.f32 %v356, %v375
    %v380 = vadd.f32 %v357, %v376
    %v381 = vadd.f32 %v358, %v377
    %s382 = scalar_lea.vmem %s1, 4
    %v383 = vld [vmem:[%s382] ss:$8 sm:$0x3]
    %s384 = sadd.s32 %s362, 64
    %s385 = smul.addr %s384, 8
    %s386 = scalar_lea.vmem [#allocation2], %s385
    %v387 = vld [vmem:[%s386] sm:$0xff]
    %v388 = vld [vmem:[%s386 + $0x8] sm:$0xff]
    %v389 = vld [vmem:[%s386 + $0x10] sm:$0xff]
    %v390 = vld [vmem:[%s386 + $0x18] sm:$0xff]
    %v392 = vperm.slane %v383, 0
    %v393 = vperm.slane %v383, 1
    %v396 = vmul.f32 %v387, %v392
    %v397 = vmul.f32 %v388, %v393
    %v398 = vmul.f32 %v389, %v392
    %v399 = vmul.f32 %v390, %v393
    %v400 = vadd.f32 %v378, %v396
    %v401 = vadd.f32 %v379, %v397
    %v402 = vadd.f32 %v380, %v398
    %v403 = vadd.f32 %v381, %v399
    %s404 = scalar_lea.vmem %s1, 5
    %v405 = vld [vmem:[%s404] ss:$8 sm:$0x3]
    %s406 = sadd.s32 %s362, 128
    %s407 = smul.addr %s406, 8
    %s408 = scalar_lea.vmem [#allocation2], %s407
    %v409 = vld [vmem:[%s408] sm:$0xff]
    %v410 = vld [vmem:[%s408 + $0x8] sm:$0xff]
    %v411 = vld [vmem:[%s408 + $0x10] sm:$0xff]
    %v412 = vld [vmem:[%s408 + $0x18] sm:$0xff]
    %v414 = vperm.slane %v405, 0
    %v415 = vperm.slane %v405, 1
    %v418 = vmul.f32 %v409, %v414
    %v419 = vmul.f32 %v410, %v415
    %v420 = vmul.f32 %v411, %v414
    %v421 = vmul.f32 %v412, %v415
    %v422 = vadd.f32 %v400, %v418
    %v423 = vadd.f32 %v401, %v419
    %v424 = vadd.f32 %v402, %v420
    %v425 = vadd.f32 %v403, %v421
    %s426 = scalar_lea.vmem %s1, 6
    %v427 = vld [vmem:[%s426] ss:$8 sm:$0x3]
    %s428 = sadd.s32 %s289, 2
    %s429 = smul.u32 %s428, 4
    %s430 = smul.addr %s429, 8
    %s431 = scalar_lea.vmem [#allocation2], %s430
    %v432 = vld [vmem:[%s431] sm:$0xff]
    %v433 = vld [vmem:[%s431 + $0x8] sm:$0xff]
    %v434 = vld [vmem:[%s431 + $0x10] sm:$0xff]
    %v435 = vld [vmem:[%s431 + $0x18] sm:$0xff]
    %v437 = vperm.slane %v427, 0
    %v438 = vperm.slane %v427, 1
    %v441 = vmul.f32 %v432, %v437
    %v442 = vmul.f32 %v433, %v438
    %v443 = vmul.f32 %v434, %v437
    %v444 = vmul.f32 %v435, %v438
    %v445 = vadd.f32 %v422, %v441
    %v446 = vadd.f32 %v423, %v442
    %v447 = vadd.f32 %v424, %v443
    %v448 = vadd.f32 %v425, %v444
    %s449 = scalar_lea.vmem %s1, 7
    %v450 = vld [vmem:[%s449] ss:$8 sm:$0x3]
    %s451 = sadd.s32 %s429, 64
    %s452 = smul.addr %s451, 8
    %s453 = scalar_lea.vmem [#allocation2], %s452
    %v454 = vld [vmem:[%s453] sm:$0xff]
    %v455 = vld [vmem:[%s453 + $0x8] sm:$0xff]
    %v456 = vld [vmem:[%s453 + $0x10] sm:$0xff]
    %v457 = vld [vmem:[%s453 + $0x18] sm:$0xff]
    %v459 = vperm.slane %v450, 0
    %v460 = vperm.slane %v450, 1
    %v463 = vmul.f32 %v454, %v459
    %v464 = vmul.f32 %v455, %v460
    %v465 = vmul.f32 %v456, %v459
    %v466 = vmul.f32 %v457, %v460
    %v467 = vadd.f32 %v445, %v463
    %v468 = vadd.f32 %v446, %v464
    %v469 = vadd.f32 %v447, %v465
    %v470 = vadd.f32 %v448, %v466
    %s471 = scalar_lea.vmem %s1, 16
    %v472 = vld [vmem:[%s471] ss:$8 sm:$0x3]
    %s473 = sadd.s32 %s429, 128
    %s474 = smul.addr %s473, 8
    %s475 = scalar_lea.vmem [#allocation2], %s474
    %v476 = vld [vmem:[%s475] sm:$0xff]
    %v477 = vld [vmem:[%s475 + $0x8] sm:$0xff]
    %v478 = vld [vmem:[%s475 + $0x10] sm:$0xff]
    %v479 = vld [vmem:[%s475 + $0x18] sm:$0xff]
    %v481 = vperm.slane %v472, 0
    %v482 = vperm.slane %v472, 1
    %v485 = vmul.f32 %v476, %v481
    %v486 = vmul.f32 %v477, %v482
    %v487 = vmul.f32 %v478, %v481
    %v488 = vmul.f32 %v479, %v482
    %v489 = vadd.f32 %v467, %v485
    %v490 = vadd.f32 %v468, %v486
    %v491 = vadd.f32 %v469, %v487
    %v492 = vadd.f32 %v470, %v488
    %s493 = smul.addr %s295, 8
    %s494 = scalar_lea.vmem %s4, %s493
    %495 = vst [vmem:[%s494] sm:$0xff] %v489
    %496 = vst [vmem:[%s494 + $0x8] sm:$0xff] %v490
    %497 = vst [vmem:[%s494 + $0x10] sm:$0xff] %v491
    %498 = vst [vmem:[%s494 + $0x18] sm:$0xff] %v492
    %v499 = vld [vmem:[#allocation3] sm:$0x3]
    %v500 = vadd.f32 %v489, %v491
    %v501 = vrot.slane %v500, 4
    %v502 = vadd.f32 %v500, %v501
    %v503 = vrot.slane %v502, 2
    %v504 = vadd.f32 %v502, %v503
    %v505 = vrot.slane %v504, 1
    %v506 = vadd.f32 %v504, %v505
    %v507 = vadd.f32 %v490, %v492
    %v508 = vrot.slane %v507, 4
    %v509 = vadd.f32 %v507, %v508
    %v510 = vrot.slane %v509, 2
    %v511 = vadd.f32 %v509, %v510
    %v512 = vrot.slane %v511, 1
    %v513 = vadd.f32 %v511, %v512
    %v516 = vrot.slane %v513, 7
    %vm517 = vcmask 1040384
    %v518 = vsel %vm517, %v506, %v516
    %v520 = vadd.f32 %v499, %v518
    %521 = vst.msk [vmem:[#allocation3] sm:$0x3] %vm212, %v520
    %v522 = vld [vmem:[#allocation4] sm:$0x3]
    %v523 = vmul.f32 %v489, %v489
    %v524 = vmul.f32 %v490, %v490
    %v525 = vmul.f32 %v491, %v491
    %v526 = vmul.f32 %v492, %v492
    %v527 = vadd.f32 %v523, %v525
    %v528 = vrot.slane %v527, 4
    %v529 = vadd.f32 %v527, %v528
    %v530 = vrot.slane %v529, 2
    %v531 = vadd.f32 %v529, %v530
    %v532 = vrot.slane %v531, 1
    %v533 = vadd.f32 %v531, %v532
    %v534 = vadd.f32 %v524, %v526
    %v535 = vrot.slane %v534, 4
    %v536 = vadd.f32 %v534, %v535
    %v537 = vrot.slane %v536, 2
    %v538 = vadd.f32 %v536, %v537
    %v539 = vrot.slane %v538, 1
    %v540 = vadd.f32 %v538, %v539
    %v543 = vrot.slane %v540, 7
    %v544 = vsel %vm517, %v533, %v543
    %v546 = vadd.f32 %v522, %v544
    %547 = vst.msk [vmem:[#allocation4] sm:$0x3] %vm212, %v546
  $region29: #{dwconv_bn.1} parent=0 // loop_footer
    %s293 = sadd.s32 1, %s289
  $region30: #{dwconv_bn.1} parent=0 // loop_footer_branch
    %288 = sbr.rel target = $region26
  $region31: #{dwconv_bn.1} parent=0 // loop_exit
    _
  %v548 = vld [vmem:[#allocation3] sm:$0x3]
  %v549 = vmul.f32 %v548, 0.0051020407
  %v550 = vld [vmem:[#allocation4] sm:$0x3]
  %v551 = vmul.f32 %v550, 0.0051020407
  %v552 = vmul.f32 %v549, %v549
  %v553 = vsub.f32 %v551, %v552
  %v554 = vld [vmem:[%s2] sm:$0x3]
  %v555 = vadd.f32 %v553, 1e-05
  %v556 = vrsqrt.pop %v555
  %v557 = vmul.f32 %v556, %v555
  %v558 = vmul.f32 %v557, %v556
  %v559 = vmul.f32 0.5, %v558
  %v560 = vsub.f32 1.5, %v559
  %v561 = vmul.f32 %v556, %v560
  %vm562 = vweird.f32 %v555
  %vm563 = vweird.f32 %v556
  %vm564 = vmor %vm562, %vm563
  %v565 = vsel %vm564, %v556, %v561
  %v566 = vmul.f32 %v554, %v565
  %v567 = vld [vmem:[%s3] sm:$0x3]
  %v568 = vmul.f32 %v549, %v566
  %v569 = vsub.f32 %v567, %v568
  loop: start=0, step=1, limit=14
  $region32: #{dwconv_bn.1} parent=0 // loop_pre_header
    _
  $region33: #{dwconv_bn.1} parent=0 // loop_header
    %s571 = sphi 0, %s575
    %p572 = scmp.ge.s32.totalorder %s571, 14
  $region34: #{dwconv_bn.1} parent=0 // loop_header_branch
    %574 = sbr.rel (%p572) target = $region38
  $region35: #{dwconv_bn.1} parent=0 // loop_body
    %s576 = smul.u32 %s571, 4
    %s577 = smul.addr %s576, 8
    %s578 = scalar_lea.vmem %s4, %s577
    %v579 = vld [vmem:[%s578] sm:$0xff]
    %v580 = vld [vmem:[%s578 + $0x8] sm:$0xff]
    %v581 = vld [vmem:[%s578 + $0x10] sm:$0xff]
    %v582 = vld [vmem:[%s578 + $0x18] sm:$0xff]
    %v584 = vperm.slane %v566, 0
    %v585 = vperm.slane %v566, 1
    %v588 = vmul.f32 %v579, %v584
    %v589 = vmul.f32 %v580, %v585
    %v590 = vmul.f32 %v581, %v584
    %v591 = vmul.f32 %v582, %v585
    %v593 = vperm.slane %v569, 0
    %v594 = vperm.slane %v569, 1
    %v597 = vadd.f32 %v588, %v593
    %v598 = vadd.f32 %v589, %v594
    %v599 = vadd.f32 %v590, %v593
    %v600 = vadd.f32 %v591, %v594
    %601 = vst [vmem:[%s578] sm:$0xff] %v597
    %602 = vst [vmem:[%s578 + $0x8] sm:$0xff] %v598
    %603 = vst [vmem:[%s578 + $0x10] sm:$0xff] %v599
    %604 = vst [vmem:[%s578 + $0x18] sm:$0xff] %v600
  $region36: #{dwconv_bn.1} parent=0 // loop_footer
    %s575 = sadd.s32 1, %s571
  $region37: #{dwconv_bn.1} parent=0 // loop_footer_branch
    %570 = sbr.rel target = $region33
  $region38: #{dwconv_bn.1} parent=0 // loop_exit
    _
  // Predicated region
  $region39: #{dwconv_bn.1} parent=0 // pred_check
    _
  $region40: #{dwconv_bn.1} parent=0 // pred_check_branch
    %606 = sbr.rel (0) target = $region42
  $region41: #{dwconv_bn.1} parent=0 // pred_region
    _
  $region42: #{dwconv_bn.1} parent=0 // pred_fallthru
    _
  // Predicated region
  $region43: #{dwconv_bn.1} parent=0 // pred_check
    _
  $region44: #{dwconv_bn.1} parent=0 // pred_check_branch
    %608 = sbr.rel (0) target = $region46
  $region45: #{dwconv_bn.1} parent=0 // pred_region
    _
  $region46: #{dwconv_bn.1} parent=0 // pred_fallthru
    _

</llo_original>
